<compile_context>
chip_gen: v7x
topology: tpu7x:2x2x1
jax: 0.10.0
libtpu: 0.0.40
codegen_flags: <defaults>
</compile_context>

<pallas_src>
import jax
import jax.numpy as jnp
from jax.experimental import pallas as pl
from jax.experimental.pallas import tpu as pltpu

KH = KW = 3   # kernel_size=3, padding=1 (matches the PyTorch default)


def spatial_attention_kernel(x_ref, w_ref, o_ref, pad_ref):
    """One batch element per grid step.

    x_ref  : (1, C, H, W)   VMEM  input block
    w_ref  : (2*3*3,)       SMEM  conv1 weight, OIHW flattened (O=1, I=2)
    o_ref  : (1, 1, H, W)   VMEM  output block
    pad_ref: (2, H+2, W+2)  VMEM  scratch: channel-pooled planes + 1-px zero halo
    """
    H = o_ref.shape[2]
    W = o_ref.shape[3]

    x = x_ref[0].astype(jnp.float32)                     # (C, H, W)

    # Channel pooling (elementwise over the C planes on the VPU).
    avg = jnp.mean(x, axis=0)                            # (H, W)
    mx = jnp.max(x, axis=0)                              # (H, W)

    # Tiny padded scratch; the zero border implements conv padding=1.
    # Re-zeroed every step (cheap) so the halo is valid on every core / step.
    pad_ref[...] = jnp.zeros_like(pad_ref)
    pad_ref[0, 1:H + 1, 1:W + 1] = avg
    pad_ref[1, 1:H + 1, 1:W + 1] = mx

    pad = pad_ref[...]                                   # (2, H+2, W+2), ~8 vregs

    # Direct 3x3 conv, 2 -> 1 channels, no bias: 18 scalar-weight MACs (VPU).
    acc = jnp.zeros((H, W), jnp.float32)
    for cin in range(2):
        for ki in range(KH):
            for kj in range(KW):
                wtap = w_ref[(cin * KH + ki) * KW + kj]
                acc = acc + wtap * pad[cin, ki:ki + H, kj:kj + W]

    # Sigmoid (exp runs on the EUP).
    o_ref[0, 0, :, :] = (1.0 / (1.0 + jnp.exp(-acc))).astype(o_ref.dtype)


def spatial_attention_forward(x, w):
    """x: (B, C, H, W) NCHW. w: (1, 2, 3, 3) OIHW conv1 weight (bias=False)."""
    B, C, H, W = x.shape
    w_flat = w.reshape(-1).astype(jnp.float32)           # (18,)

    return pl.pallas_call(
        spatial_attention_kernel,
        out_shape=jax.ShapeDtypeStruct((B, 1, H, W), jnp.float32),
        grid_spec=pltpu.PrefetchScalarGridSpec(
            num_scalar_prefetch=0,
            grid=(B,),
            in_specs=[
                pl.BlockSpec((1, C, H, W), lambda b: (b, 0, 0, 0)),
                pl.BlockSpec(memory_space=pltpu.MemorySpace.SMEM),
            ],
            out_specs=pl.BlockSpec((1, 1, H, W), lambda b: (b, 0, 0, 0)),
            scratch_shapes=[pltpu.VMEM((2, H + 2, W + 2), jnp.float32)],
        ),
        compiler_params=pltpu.CompilerParams(
            dimension_semantics=("parallel",)),
    )(x.astype(jnp.float32), w_flat)


def reference_forward(x, w):
    """Plain-JAX reference mirroring the PyTorch module."""
    avg = jnp.mean(x, axis=1, keepdims=True)
    mx = jnp.max(x, axis=1, keepdims=True)
    cat = jnp.concatenate([avg, mx], axis=1)              # (B, 2, H, W)
    y = jax.lax.conv_general_dilated(
        cat, w, window_strides=(1, 1), padding=((1, 1), (1, 1)),
        dimension_numbers=("NCHW", "OIHW", "NCHW"))
    return jax.nn.sigmoid(y)


if __name__ == "__main__":
    B, C, H, W = 2, 4, 16, 16

    key = jax.random.PRNGKey(0)
    kx, kw = jax.random.split(key)

    x = jax.random.normal(kx, (B, C, H, W), dtype=jnp.float32)
    w = 0.3 * jax.random.normal(kw, (1, 2, KH, KW), dtype=jnp.float32)  # conv1 OIHW

    out = jax.block_until_ready(spatial_attention_forward(x, w))
    ref = jax.block_until_ready(reference_forward(x, w))

    assert out.shape == (B, 1, H, W), out.shape
    assert jnp.allclose(out, ref, atol=1e-3, rtol=1e-3), \
        f"max abs err = {jnp.max(jnp.abs(out - ref))}"

    print("KERNEL_OK")
</pallas_src>

<mosaic_0001>
module attributes {stable_mosaic.version = 11 : i64} {
  func.func @spatial_attention_kernel(%arg0: i32, %arg1: memref<1x4x16x16xf32, #tpu.memory_space<vmem>>, %arg2: memref<18xf32, #tpu.memory_space<smem>>, %arg3: memref<1x1x16x16xf32, #tpu.memory_space<vmem>>, %arg4: memref<2x18x18xf32, #tpu.memory_space<vmem>>) attributes {dimension_semantics = [#tpu.dimension_semantics<parallel>], iteration_bounds = array<i64: 2>, scalar_prefetch = 0 : i64, scratch_operands = 1 : i64, tpu.core_type = #tpu.core_type<tc>, window_params = [{transform_indices = @transform_0, window_bounds = array<i64: 1, 4, 16, 16>}, {transform_indices = @transform_1, window_bounds = array<i64: 18>}, {transform_indices = @transform_2, window_bounds = array<i64: 1, 1, 16, 16>}]} {
    %c0 = arith.constant 0 : index
    %c0_0 = arith.constant 0 : index
    %c0_1 = arith.constant 0 : index
    %c0_2 = arith.constant 0 : index
    %0 = vector.load %arg1[%c0, %c0_0, %c0_1, %c0_2] : memref<1x4x16x16xf32, #tpu.memory_space<vmem>>, vector<1x4x16x16xf32>
    %1 = vector.shape_cast %0 : vector<1x4x16x16xf32> to vector<4x16x16xf32>
    %cst = arith.constant dense<0.000000e+00> : vector<16x16xf32>
    %2 = vector.multi_reduction <add>, %1, %cst [0] : vector<4x16x16xf32> to vector<16x16xf32>
    %cst_3 = arith.constant 4.000000e+00 : f32
    %3 = vector.broadcast %cst_3 : f32 to vector<16x16xf32>
    %4 = arith.divf %2, %3 : vector<16x16xf32>
    %cst_4 = arith.constant dense<0xFF800000> : vector<16x16xf32>
    %5 = vector.multi_reduction <maximumf>, %1, %cst_4 [0] : vector<4x16x16xf32> to vector<16x16xf32>
    %cst_5 = arith.constant 0.000000e+00 : f32
    %6 = vector.broadcast %cst_5 : f32 to vector<2x18x18xf32>
    %c0_6 = arith.constant 0 : index
    %c0_7 = arith.constant 0 : index
    %c0_8 = arith.constant 0 : index
    %7 = vector.load %arg4[%c0_6, %c0_7, %c0_8] : memref<2x18x18xf32, #tpu.memory_space<vmem>>, vector<2x18x18xf32>
    tpu.vector_store %arg4[%c0_6, %c0_7, %c0_8], %6 {strides = array<i32>} : memref<2x18x18xf32, #tpu.memory_space<vmem>>, vector<2x18x18xf32>,
    %c0_9 = arith.constant 0 : index
    %c1 = arith.constant 1 : index
    %c1_10 = arith.constant 1 : index
    %8 = vector.load %arg4[%c0_9, %c1, %c1_10] : memref<2x18x18xf32, #tpu.memory_space<vmem>>, vector<1x16x16xf32>
    %9 = vector.shape_cast %8 : vector<1x16x16xf32> to vector<16x16xf32>
    %10 = vector.shape_cast %4 : vector<16x16xf32> to vector<1x16x16xf32>
    tpu.vector_store %arg4[%c0_9, %c1, %c1_10], %10 {strides = array<i32>} : memref<2x18x18xf32, #tpu.memory_space<vmem>>, vector<1x16x16xf32>,
    %c1_11 = arith.constant 1 : index
    %c1_12 = arith.constant 1 : index
    %c1_13 = arith.constant 1 : index
    %11 = vector.load %arg4[%c1_11, %c1_12, %c1_13] : memref<2x18x18xf32, #tpu.memory_space<vmem>>, vector<1x16x16xf32>
    %12 = vector.shape_cast %11 : vector<1x16x16xf32> to vector<16x16xf32>
    %13 = vector.shape_cast %5 : vector<16x16xf32> to vector<1x16x16xf32>
    tpu.vector_store %arg4[%c1_11, %c1_12, %c1_13], %13 {strides = array<i32>} : memref<2x18x18xf32, #tpu.memory_space<vmem>>, vector<1x16x16xf32>,
    %c0_14 = arith.constant 0 : index
    %c0_15 = arith.constant 0 : index
    %c0_16 = arith.constant 0 : index
    %14 = vector.load %arg4[%c0_14, %c0_15, %c0_16] : memref<2x18x18xf32, #tpu.memory_space<vmem>>, vector<2x18x18xf32>
    %cst_17 = arith.constant 0.000000e+00 : f32
    %15 = vector.broadcast %cst_17 : f32 to vector<16x16xf32>
    %c0_18 = arith.constant 0 : index
    %16 = memref.load %arg2[%c0_18] : memref<18xf32, #tpu.memory_space<smem>>
    %17 = vector.extract_strided_slice %14 {offsets = [0, 0, 0], sizes = [1, 16, 16], strides = [1, 1, 1]} : vector<2x18x18xf32> to vector<1x16x16xf32>
    %18 = vector.shape_cast %17 : vector<1x16x16xf32> to vector<16x16xf32>
    %19 = vector.broadcast %16 : f32 to vector<16x16xf32>
    %20 = arith.mulf %19, %18 : vector<16x16xf32>
    %21 = arith.addf %15, %20 : vector<16x16xf32>
    %c1_19 = arith.constant 1 : index
    %22 = memref.load %arg2[%c1_19] : memref<18xf32, #tpu.memory_space<smem>>
    %23 = vector.extract_strided_slice %14 {offsets = [0, 0, 1], sizes = [1, 16, 16], strides = [1, 1, 1]} : vector<2x18x18xf32> to vector<1x16x16xf32>
    %24 = vector.shape_cast %23 : vector<1x16x16xf32> to vector<16x16xf32>
    %25 = vector.broadcast %22 : f32 to vector<16x16xf32>
    %26 = arith.mulf %25, %24 : vector<16x16xf32>
    %27 = arith.addf %21, %26 : vector<16x16xf32>
    %c2 = arith.constant 2 : index
    %28 = memref.load %arg2[%c2] : memref<18xf32, #tpu.memory_space<smem>>
    %29 = vector.extract_strided_slice %14 {offsets = [0, 0, 2], sizes = [1, 16, 16], strides = [1, 1, 1]} : vector<2x18x18xf32> to vector<1x16x16xf32>
    %30 = vector.shape_cast %29 : vector<1x16x16xf32> to vector<16x16xf32>
    %31 = vector.broadcast %28 : f32 to vector<16x16xf32>
    %32 = arith.mulf %31, %30 : vector<16x16xf32>
    %33 = arith.addf %27, %32 : vector<16x16xf32>
    %c3 = arith.constant 3 : index
    %34 = memref.load %arg2[%c3] : memref<18xf32, #tpu.memory_space<smem>>
    %35 = vector.extract_strided_slice %14 {offsets = [0, 1, 0], sizes = [1, 16, 16], strides = [1, 1, 1]} : vector<2x18x18xf32> to vector<1x16x16xf32>
    %36 = vector.shape_cast %35 : vector<1x16x16xf32> to vector<16x16xf32>
    %37 = vector.broadcast %34 : f32 to vector<16x16xf32>
    %38 = arith.mulf %37, %36 : vector<16x16xf32>
    %39 = arith.addf %33, %38 : vector<16x16xf32>
    %c4 = arith.constant 4 : index
    %40 = memref.load %arg2[%c4] : memref<18xf32, #tpu.memory_space<smem>>
    %41 = vector.extract_strided_slice %14 {offsets = [0, 1, 1], sizes = [1, 16, 16], strides = [1, 1, 1]} : vector<2x18x18xf32> to vector<1x16x16xf32>
    %42 = vector.shape_cast %41 : vector<1x16x16xf32> to vector<16x16xf32>
    %43 = vector.broadcast %40 : f32 to vector<16x16xf32>
    %44 = arith.mulf %43, %42 : vector<16x16xf32>
    %45 = arith.addf %39, %44 : vector<16x16xf32>
    %c5 = arith.constant 5 : index
    %46 = memref.load %arg2[%c5] : memref<18xf32, #tpu.memory_space<smem>>
    %47 = vector.extract_strided_slice %14 {offsets = [0, 1, 2], sizes = [1, 16, 16], strides = [1, 1, 1]} : vector<2x18x18xf32> to vector<1x16x16xf32>
    %48 = vector.shape_cast %47 : vector<1x16x16xf32> to vector<16x16xf32>
    %49 = vector.broadcast %46 : f32 to vector<16x16xf32>
    %50 = arith.mulf %49, %48 : vector<16x16xf32>
    %51 = arith.addf %45, %50 : vector<16x16xf32>
    %c6 = arith.constant 6 : index
    %52 = memref.load %arg2[%c6] : memref<18xf32, #tpu.memory_space<smem>>
    %53 = vector.extract_strided_slice %14 {offsets = [0, 2, 0], sizes = [1, 16, 16], strides = [1, 1, 1]} : vector<2x18x18xf32> to vector<1x16x16xf32>
    %54 = vector.shape_cast %53 : vector<1x16x16xf32> to vector<16x16xf32>
    %55 = vector.broadcast %52 : f32 to vector<16x16xf32>
    %56 = arith.mulf %55, %54 : vector<16x16xf32>
    %57 = arith.addf %51, %56 : vector<16x16xf32>
    %c7 = arith.constant 7 : index
    %58 = memref.load %arg2[%c7] : memref<18xf32, #tpu.memory_space<smem>>
    %59 = vector.extract_strided_slice %14 {offsets = [0, 2, 1], sizes = [1, 16, 16], strides = [1, 1, 1]} : vector<2x18x18xf32> to vector<1x16x16xf32>
    %60 = vector.shape_cast %59 : vector<1x16x16xf32> to vector<16x16xf32>
    %61 = vector.broadcast %58 : f32 to vector<16x16xf32>
    %62 = arith.mulf %61, %60 : vector<16x16xf32>
    %63 = arith.addf %57, %62 : vector<16x16xf32>
    %c8 = arith.constant 8 : index
    %64 = memref.load %arg2[%c8] : memref<18xf32, #tpu.memory_space<smem>>
    %65 = vector.extract_strided_slice %14 {offsets = [0, 2, 2], sizes = [1, 16, 16], strides = [1, 1, 1]} : vector<2x18x18xf32> to vector<1x16x16xf32>
    %66 = vector.shape_cast %65 : vector<1x16x16xf32> to vector<16x16xf32>
    %67 = vector.broadcast %64 : f32 to vector<16x16xf32>
    %68 = arith.mulf %67, %66 : vector<16x16xf32>
    %69 = arith.addf %63, %68 : vector<16x16xf32>
    %c9 = arith.constant 9 : index
    %70 = memref.load %arg2[%c9] : memref<18xf32, #tpu.memory_space<smem>>
    %71 = vector.extract_strided_slice %14 {offsets = [1, 0, 0], sizes = [1, 16, 16], strides = [1, 1, 1]} : vector<2x18x18xf32> to vector<1x16x16xf32>
    %72 = vector.shape_cast %71 : vector<1x16x16xf32> to vector<16x16xf32>
    %73 = vector.broadcast %70 : f32 to vector<16x16xf32>
    %74 = arith.mulf %73, %72 : vector<16x16xf32>
    %75 = arith.addf %69, %74 : vector<16x16xf32>
    %c10 = arith.constant 10 : index
    %76 = memref.load %arg2[%c10] : memref<18xf32, #tpu.memory_space<smem>>
    %77 = vector.extract_strided_slice %14 {offsets = [1, 0, 1], sizes = [1, 16, 16], strides = [1, 1, 1]} : vector<2x18x18xf32> to vector<1x16x16xf32>
    %78 = vector.shape_cast %77 : vector<1x16x16xf32> to vector<16x16xf32>
    %79 = vector.broadcast %76 : f32 to vector<16x16xf32>
    %80 = arith.mulf %79, %78 : vector<16x16xf32>
    %81 = arith.addf %75, %80 : vector<16x16xf32>
    %c11 = arith.constant 11 : index
    %82 = memref.load %arg2[%c11] : memref<18xf32, #tpu.memory_space<smem>>
    %83 = vector.extract_strided_slice %14 {offsets = [1, 0, 2], sizes = [1, 16, 16], strides = [1, 1, 1]} : vector<2x18x18xf32> to vector<1x16x16xf32>
    %84 = vector.shape_cast %83 : vector<1x16x16xf32> to vector<16x16xf32>
    %85 = vector.broadcast %82 : f32 to vector<16x16xf32>
    %86 = arith.mulf %85, %84 : vector<16x16xf32>
    %87 = arith.addf %81, %86 : vector<16x16xf32>
    %c12 = arith.constant 12 : index
    %88 = memref.load %arg2[%c12] : memref<18xf32, #tpu.memory_space<smem>>
    %89 = vector.extract_strided_slice %14 {offsets = [1, 1, 0], sizes = [1, 16, 16], strides = [1, 1, 1]} : vector<2x18x18xf32> to vector<1x16x16xf32>
    %90 = vector.shape_cast %89 : vector<1x16x16xf32> to vector<16x16xf32>
    %91 = vector.broadcast %88 : f32 to vector<16x16xf32>
    %92 = arith.mulf %91, %90 : vector<16x16xf32>
    %93 = arith.addf %87, %92 : vector<16x16xf32>
    %c13 = arith.constant 13 : index
    %94 = memref.load %arg2[%c13] : memref<18xf32, #tpu.memory_space<smem>>
    %95 = vector.extract_strided_slice %14 {offsets = [1, 1, 1], sizes = [1, 16, 16], strides = [1, 1, 1]} : vector<2x18x18xf32> to vector<1x16x16xf32>
    %96 = vector.shape_cast %95 : vector<1x16x16xf32> to vector<16x16xf32>
    %97 = vector.broadcast %94 : f32 to vector<16x16xf32>
    %98 = arith.mulf %97, %96 : vector<16x16xf32>
    %99 = arith.addf %93, %98 : vector<16x16xf32>
    %c14 = arith.constant 14 : index
    %100 = memref.load %arg2[%c14] : memref<18xf32, #tpu.memory_space<smem>>
    %101 = vector.extract_strided_slice %14 {offsets = [1, 1, 2], sizes = [1, 16, 16], strides = [1, 1, 1]} : vector<2x18x18xf32> to vector<1x16x16xf32>
    %102 = vector.shape_cast %101 : vector<1x16x16xf32> to vector<16x16xf32>
    %103 = vector.broadcast %100 : f32 to vector<16x16xf32>
    %104 = arith.mulf %103, %102 : vector<16x16xf32>
    %105 = arith.addf %99, %104 : vector<16x16xf32>
    %c15 = arith.constant 15 : index
    %106 = memref.load %arg2[%c15] : memref<18xf32, #tpu.memory_space<smem>>
    %107 = vector.extract_strided_slice %14 {offsets = [1, 2, 0], sizes = [1, 16, 16], strides = [1, 1, 1]} : vector<2x18x18xf32> to vector<1x16x16xf32>
    %108 = vector.shape_cast %107 : vector<1x16x16xf32> to vector<16x16xf32>
    %109 = vector.broadcast %106 : f32 to vector<16x16xf32>
    %110 = arith.mulf %109, %108 : vector<16x16xf32>
    %111 = arith.addf %105, %110 : vector<16x16xf32>
    %c16 = arith.constant 16 : index
    %112 = memref.load %arg2[%c16] : memref<18xf32, #tpu.memory_space<smem>>
    %113 = vector.extract_strided_slice %14 {offsets = [1, 2, 1], sizes = [1, 16, 16], strides = [1, 1, 1]} : vector<2x18x18xf32> to vector<1x16x16xf32>
    %114 = vector.shape_cast %113 : vector<1x16x16xf32> to vector<16x16xf32>
    %115 = vector.broadcast %112 : f32 to vector<16x16xf32>
    %116 = arith.mulf %115, %114 : vector<16x16xf32>
    %117 = arith.addf %111, %116 : vector<16x16xf32>
    %c17 = arith.constant 17 : index
    %118 = memref.load %arg2[%c17] : memref<18xf32, #tpu.memory_space<smem>>
    %119 = vector.extract_strided_slice %14 {offsets = [1, 2, 2], sizes = [1, 16, 16], strides = [1, 1, 1]} : vector<2x18x18xf32> to vector<1x16x16xf32>
    %120 = vector.shape_cast %119 : vector<1x16x16xf32> to vector<16x16xf32>
    %121 = vector.broadcast %118 : f32 to vector<16x16xf32>
    %122 = arith.mulf %121, %120 : vector<16x16xf32>
    %123 = arith.addf %117, %122 : vector<16x16xf32>
    %cst_20 = arith.constant 0.000000e+00 : f32
    %124 = vector.broadcast %cst_20 : f32 to vector<16x16xf32>
    %125 = arith.subf %124, %123 : vector<16x16xf32>
    %126 = math.exp %125 : vector<16x16xf32>
    %cst_21 = arith.constant 1.000000e+00 : f32
    %127 = vector.broadcast %cst_21 : f32 to vector<16x16xf32>
    %128 = arith.addf %127, %126 : vector<16x16xf32>
    %cst_22 = arith.constant 1.000000e+00 : f32
    %129 = vector.broadcast %cst_22 : f32 to vector<16x16xf32>
    %130 = arith.divf %129, %128 : vector<16x16xf32>
    %c0_23 = arith.constant 0 : index
    %c0_24 = arith.constant 0 : index
    %c0_25 = arith.constant 0 : index
    %c0_26 = arith.constant 0 : index
    %131 = vector.load %arg3[%c0_23, %c0_24, %c0_25, %c0_26] : memref<1x1x16x16xf32, #tpu.memory_space<vmem>>, vector<1x1x16x16xf32>
    %132 = vector.shape_cast %131 : vector<1x1x16x16xf32> to vector<16x16xf32>
    %133 = vector.shape_cast %130 : vector<16x16xf32> to vector<1x1x16x16xf32>
    tpu.vector_store %arg3[%c0_23, %c0_24, %c0_25, %c0_26], %133 {strides = array<i32>} : memref<1x1x16x16xf32, #tpu.memory_space<vmem>>, vector<1x1x16x16xf32>,
    return
  }
  func.func @transform_0(%arg0: i32) -> (i32, i32, i32, i32) {
    %c0_i32 = arith.constant 0 : i32
    %c0_i32_0 = arith.constant 0 : i32
    %c0_i32_1 = arith.constant 0 : i32
    %c0_i32_2 = arith.constant 0 : i32
    return %arg0, %c0_i32, %c0_i32_0, %c0_i32_1 : i32, i32, i32, i32
  }
  func.func @transform_1(%arg0: i32) -> i32 {
    %c0_i32 = arith.constant 0 : i32
    %c0_i32_0 = arith.constant 0 : i32
    return %c0_i32 : i32
  }
  func.func @transform_2(%arg0: i32) -> (i32, i32, i32, i32) {
    %c0_i32 = arith.constant 0 : i32
    %c0_i32_0 = arith.constant 0 : i32
    %c0_i32_1 = arith.constant 0 : i32
    %c0_i32_2 = arith.constant 0 : i32
    return %arg0, %c0_i32, %c0_i32_0, %c0_i32_1 : i32, i32, i32, i32
  }
}

</mosaic_0001>

<llo_original>
// kernel: tpu_custom_call.1
$region0: #{tpu_custom_call.1}
  #allocation0 [shape = 'u32[]', space=smem, size = 0x4, offset = 0x4, fixed_abs, tag = 'smem constant byte address 0x4 - core index']
  #allocation1 [shape = 'u32[144,128]{1,0:T(1,128)}', space=vmem, size = 0x12000, scoped, tag = 'internal scratch']
  #allocation2 [shape = 'f32[2,18,18]{2,1,0:T(8,128)}', space=vmem, size = 0x6000, scoped, tag = 'scratch operand']
  %s0 = inlined_call_operand.hbm [shape: f32[2,4,16,16], index: 0, kind: input, shape index: {}]
  %s1 = inlined_call_operand.vmem [shape: f32[18], index: 1, kind: input, shape index: {}]
  %s2 = inlined_call_operand.hbm [shape: f32[2,1,16,16], index: 2, kind: output, shape index: {}]
  %s3 = sld [smem:[#allocation0]]
  $region49: #{tpu_custom_call.1} parent=0
    _
  %s5 = ssub.s32 1, %s3
  %s6 = scalar_select 0, %s5, %s3
  $region1: #{tpu_custom_call.1} parent=0
    #allocation3 [shape = 'u8[65536]{0}', space=vmem, size = 0x10000, scoped, tag = 'input window, operand 0']
    #allocation4 [shape = 's32[2]{0}', space=sflag, size = 0x8, scoped, tag = 'scoped memory for tpu_custom_call.1']
    #allocation5 [shape = 's32[2]{0}', space=sflag, size = 0x8, scoped, tag = 'scoped memory for tpu_custom_call.1']
    #allocation6 [shape = 's32[2]{0}', space=sflag, size = 0x8, scoped, tag = 'scoped memory for tpu_custom_call.1']
    #allocation7 [shape = 'u8[512]{0}', space=smem, size = 0x200, scoped, tag = 'input window, operand 1, single buffered']
    #allocation8 [shape = 'u8[16384]{0}', space=vmem, size = 0x4000, scoped, tag = 'output window, operand 0']
    %7 = vsyncpa [#allocation4], 0
    %s8 = scalar_lea.sflag [#allocation4], 1
    %9 = vsyncpa %s8, 0
    %10 = vsyncpa [#allocation6], 0
    %11 = vsyncpa [#allocation5], 0
    %s12 = scalar_lea.sflag [#allocation5], 1
    %13 = vsyncpa %s12, 0
    loop: start=0, step=1, limit=4
    $region2: #{tpu_custom_call.1} parent=1 // loop_pre_header
      _
    $region3: #{tpu_custom_call.1} parent=1 // loop_header
      %s15 = sphi 0, %s19
      %p16 = scmp.ge.s32.totalorder %s15, 4
      %s25 = sphi 0, %s27
      %s28 = sphi 0, %s25
      %s29 = sphi 0, %s28
      %s45 = sphi 0, %s29
      %s49 = sphi 0, %s49
      %s51 = sphi 0, %s49
      %s52 = sphi 0, %s51
      %s66 = sphi 0, %s52
      %s72 = sphi 0, %s74
      %s75 = sphi 0, %s72
      %s76 = sphi 0, %s75
      %s92 = sphi 0, %s76
    $region4: #{tpu_custom_call.1} parent=1 // loop_header_branch
      %18 = sbr.rel (%p16) target = $region8
    $region5: #{tpu_custom_call.1} parent=1 // loop_body
      %s20 = ssub.s32 %s15, 1
      %s21 = ssub.s32 %s15, 2
      %s22 = sadd.s32 %s15, 1
      %s23 = ssub.s32 %s15, %s22
      %p24 = scmp.eq.s32.totalorder %s23, 0
      %s26 = sadd.s32 %s25, 1
      %s27 = scalar_select %p24, %s25, %s26
      %p30 = pneg %p24
      %p31 = scmp.eq.s32.totalorder %s15, 1
      %p32 = por %p30, %p31
      %p33 = scmp.ne.s32.totalorder %s25, %s28
      %p34 = scmp.eq.s32.totalorder %s15, 0
      %p35 = por %p33, %p34
      %p36 = scmp.ne.s32.totalorder %s25, %s28
      %p37 = scmp.eq.s32.totalorder %s20, 1
      %p38 = por %p36, %p37
      %p39 = scmp.ne.s32.totalorder %s28, %s29
      %p40 = scmp.eq.s32.totalorder %s20, 0
      %p41 = por %p39, %p40
      %p42 = scmp.ne.s32.totalorder %s28, %s29
      %p43 = scmp.eq.s32.totalorder %s21, 1
      %p44 = por %p42, %p43
      %p46 = scmp.ne.s32.totalorder %s29, %s45
      %p47 = scmp.eq.s32.totalorder %s21, 0
      %p48 = por %p46, %p47
      %s50 = sadd.s32 %s49, 1
      %p53 = scmp.eq.s32.totalorder %s15, 1
      %p54 = scmp.ne.s32.totalorder %s49, %s51
      %p55 = scmp.eq.s32.totalorder %s15, 0
      %p56 = por %p54, %p55
      %p57 = scmp.ne.s32.totalorder %s49, %s51
      %p58 = scmp.eq.s32.totalorder %s20, 1
      %p59 = por %p57, %p58
      %p60 = scmp.ne.s32.totalorder %s51, %s52
      %p61 = scmp.eq.s32.totalorder %s20, 0
      %p62 = por %p60, %p61
      %p63 = scmp.ne.s32.totalorder %s51, %s52
      %p64 = scmp.eq.s32.totalorder %s21, 1
      %p65 = por %p63, %p64
      %p67 = scmp.ne.s32.totalorder %s52, %s66
      %p68 = scmp.eq.s32.totalorder %s21, 0
      %p69 = por %p67, %p68
      %s70 = ssub.s32 %s15, %s22
      %p71 = scmp.eq.s32.totalorder %s70, 0
      %s73 = sadd.s32 %s72, 1
      %s74 = scalar_select %p71, %s72, %s73
      %p77 = pneg %p71
      %p78 = scmp.eq.s32.totalorder %s15, 1
      %p79 = por %p77, %p78
      %p80 = scmp.ne.s32.totalorder %s72, %s75
      %p81 = scmp.eq.s32.totalorder %s15, 0
      %p82 = por %p80, %p81
      %p83 = scmp.ne.s32.totalorder %s72, %s75
      %p84 = scmp.eq.s32.totalorder %s20, 1
      %p85 = por %p83, %p84
      %p86 = scmp.ne.s32.totalorder %s75, %s76
      %p87 = scmp.eq.s32.totalorder %s20, 0
      %p88 = por %p86, %p87
      %p89 = scmp.ne.s32.totalorder %s75, %s76
      %p90 = scmp.eq.s32.totalorder %s21, 1
      %p91 = por %p89, %p90
      %p93 = scmp.ne.s32.totalorder %s76, %s92
      %p94 = scmp.eq.s32.totalorder %s21, 0
      %p95 = por %p93, %p94
      %p96 = scmp.le.s32.totalorder 1, %s15
      %p97 = scmp.lt.s32.totalorder %s15, 3
      %p98 = pnand %p96, %p97
      %p99 = pneg %p98
      // Predicated region
      $region9: #{tpu_custom_call.1} parent=5 // pred_check
        _
      $region10: #{tpu_custom_call.1} parent=5 // pred_check_branch
        %101 = sbr.rel (%p98) target = $region12
      $region11: #{tpu_custom_call.1} parent=5 // pred_region
        %s102 = ssub.s32 %s15, 1
        // Predicated region
        $region13: #{tpu_custom_call.1} parent=11 // pred_check
          %p103 = pneg %p62
        $region14: #{tpu_custom_call.1} parent=11 // pred_check_branch
          %105 = sbr.rel (%p103) target = $region16
        $region15: #{tpu_custom_call.1} parent=11 // pred_region
          %s107 = ssub.s32 16, 16
          %108 = vsyncadd [#allocation6], %s107
          %s110 = sshll.u32 %s1, 4
          %s111 = int_to_ptr.vmem [resolvable:$true] %s110
          %113 = dma.vmem_to_smem %s111, 16, [#allocation7], [#allocation6]
        $region16: #{tpu_custom_call.1} parent=11 // pred_fallthru
          _
      $region12: #{tpu_custom_call.1} parent=5 // pred_fallthru
        _
      %p114 = scmp.lt.s32.totalorder %s15, 2
      // Predicated region
      $region17: #{tpu_custom_call.1} parent=5 // pred_check
        %p115 = pneg %p114
      $region18: #{tpu_custom_call.1} parent=5 // pred_check_branch
        %117 = sbr.rel (%p115) target = $region20
      $region19: #{tpu_custom_call.1} parent=5 // pred_region
        // Predicated region
        $region21: #{tpu_custom_call.1} parent=19 // pred_check
          %p118 = pneg %p35
        $region22: #{tpu_custom_call.1} parent=19 // pred_check_branch
          %120 = sbr.rel (%p118) target = $region24
        $region23: #{tpu_custom_call.1} parent=19 // pred_region
          %s121 = sand.u32 %s25, 1
          %s122 = scalar_lea.sflag [#allocation4], %s121
          %s123 = sand.u32 %s25, 1
          %s124 = smul.addr %s123, 64
          %s125 = scalar_lea.vmem [#allocation3], %s124
          %s127 = ssub.s32 1024, 1024
          %128 = vsyncadd %s122, %s127
          %s129 = smul.addr %s15, 8
          %s130 = smul.addr %s129, 128
          %s131 = scalar_lea.hbm %s0, %s130
          %s132 = sshll.u32 %s125, 4
          %s133 = int_to_ptr.vmem [resolvable:$true] %s132
          %138 = dma.hbm_to_vmem [thread:$0]  %s131, 1024, %s133, %s122, 128, 128, 8
        $region24: #{tpu_custom_call.1} parent=19 // pred_fallthru
          _
      $region20: #{tpu_custom_call.1} parent=5 // pred_fallthru
        _
      %p139 = scmp.le.s32.totalorder 1, %s15
      %p140 = scmp.lt.s32.totalorder %s15, 3
      %p141 = pnand %p139, %p140
      %p142 = pneg %p141
      // Predicated region
      $region25: #{tpu_custom_call.1} parent=5 // pred_check
        _
      $region26: #{tpu_custom_call.1} parent=5 // pred_check_branch
        %144 = sbr.rel (%p141) target = $region28
      $region27: #{tpu_custom_call.1} parent=5 // pred_region
        %s145 = ssub.s32 %s15, 1
        %s146 = sand.u32 %s28, 1
        %s147 = scalar_lea.sflag [#allocation4], %s146
        %s148 = sand.u32 %s28, 1
        %s149 = smul.addr %s148, 64
        %s150 = scalar_lea.vmem [#allocation3], %s149
        // Predicated region
        $region29: #{tpu_custom_call.1} parent=27 // pred_check
          %p151 = pneg %p41
        $region30: #{tpu_custom_call.1} parent=27 // pred_check_branch
          %153 = sbr.rel (%p151) target = $region32
        $region31: #{tpu_custom_call.1} parent=27 // pred_region
          %154 = dma.done %s147, 1024
        $region32: #{tpu_custom_call.1} parent=27 // pred_fallthru
          _
        // Predicated region
        $region33: #{tpu_custom_call.1} parent=27 // pred_check
          %p155 = pneg %p62
        $region34: #{tpu_custom_call.1} parent=27 // pred_check_branch
          %157 = sbr.rel (%p155) target = $region36
        $region35: #{tpu_custom_call.1} parent=27 // pred_region
          %158 = dma.done [#allocation6], 16
        $region36: #{tpu_custom_call.1} parent=27 // pred_fallthru
          _
        %159 = sfence
        %s160 = sand.u32 %s28, 1
        %s161 = scalar_lea.sflag [#allocation4], %s160
        %s162 = sand.u32 %s28, 1
        %s163 = smul.addr %s162, 64
        %s164 = scalar_lea.vmem [#allocation3], %s163
        %p165 = pneg %p41
        %p166 = pneg %p38
        %p167 = pneg %p62
        %p168 = pneg %p59
        %p169 = pneg %p88
        %p170 = pneg %p85
        %s171 = sand.u32 %s75, 1
        %s172 = scalar_lea.sflag [#allocation5], %s171
        %s173 = sand.u32 %s75, 1
        %s174 = smul.addr %s173, 16
        %s175 = scalar_lea.vmem [#allocation8], %s174
        %v176 = vld [vmem:[%s150] sm:$0xff]
        %v177 = vld [vmem:[%s150 + $0x8] sm:$0xff]
        %v178 = vld [vmem:[%s150 + $0x10] sm:$0xff]
        %v179 = vld [vmem:[%s150 + $0x18] sm:$0xff]
        %v180 = vld [vmem:[%s150 + $0x20] sm:$0xff]
        %v181 = vld [vmem:[%s150 + $0x28] sm:$0xff]
        %v182 = vld [vmem:[%s150 + $0x30] sm:$0xff]
        %v183 = vld [vmem:[%s150 + $0x38] sm:$0xff]
        %vm184 = vcmask 130048
        %v185 = vsel %vm184, %v176, 0.0
        %v186 = vsel %vm184, %v178, 0.0
        %v187 = vadd.f32 %v185, %v186
        %v188 = vsel %vm184, %v180, 0.0
        %v189 = vadd.f32 %v187, %v188
        %v190 = vsel %vm184, %v182, 0.0
        %v191 = vadd.f32 %v189, %v190
        %v192 = vsel %vm184, %v177, 0.0
        %v193 = vsel %vm184, %v179, 0.0
        %v194 = vadd.f32 %v192, %v193
        %v195 = vsel %vm184, %v181, 0.0
        %v196 = vadd.f32 %v194, %v195
        %v197 = vsel %vm184, %v183, 0.0
        %v198 = vadd.f32 %v196, %v197
        %v199 = vrcp.pop 4.0
        %v200 = vmul.f32 %v191, %v199
        %v201 = vmul.f32 %v198, %v199
        %v202 = vsel %vm184, %v176, -inf
        %v203 = vsel %vm184, %v178, -inf
        %v204 = vsel %vm184, %v180, -inf
        %v205 = vmax.f32 %v202, %v204
        %v206 = vsel %vm184, %v182, -inf
        %v207 = vmax.f32 %v203, %v206
        %v208 = vmax.f32 %v205, %v207
        %v209 = vsel %vm184, %v177, -inf
        %v210 = vsel %vm184, %v179, -inf
        %v211 = vsel %vm184, %v181, -inf
        %v212 = vmax.f32 %v209, %v211
        %v213 = vsel %vm184, %v183, -inf
        %v214 = vmax.f32 %v210, %v213
        %v215 = vmax.f32 %v212, %v214
        %vm216 = vcmask 146432
        %217 = vst.msk [vmem:[#allocation2] sm:$0xff] %vm216, 0.0
        %218 = vst.msk [vmem:[#allocation2 + $0x8] sm:$0xff] %vm216, 0.0
        %vm219 = vcmask 140288
        %220 = vst.msk [vmem:[#allocation2 + $0x10] sm:$0x3] %vm219, 0.0
        %221 = vst.msk [vmem:[#allocation2 + $0x18] sm:$0xff] %vm216, 0.0
        %222 = vst.msk [vmem:[#allocation2 + $0x20] sm:$0xff] %vm216, 0.0
        %223 = vst.msk [vmem:[#allocation2 + $0x28] sm:$0x3] %vm219, 0.0
        %226 = vrot.lane.b32.xlu0 %v200, 1
        %v227 = vpop.permute.xlu0 %226
        %228 = vrot.lane.b32.xlu0 %v201, 1
        %v229 = vpop.permute.xlu0 %228
        %vm232 = vcmask 138248
        %233 = vst.msk [vmem:[#allocation2 + $0x1] sm:$0xff] %vm232, %v227
        %234 = vst.msk [vmem:[#allocation2 + $0x9] sm:$0xff] %vm232, %v229
        %237 = vrot.lane.b32.xlu0 %v208, 1
        %v238 = vpop.permute.xlu0 %237
        %239 = vrot.lane.b32.xlu0 %v215, 1
        %v240 = vpop.permute.xlu0 %239
        %s243 = scalar_lea.vmem [#allocation2], 24
        %244 = vst.msk [vmem:[%s243 + $0x1] sm:$0xff] %vm232, %v238
        %245 = vst.msk [vmem:[%s243 + $0x9] sm:$0xff] %vm232, %v240
        %v246 = vld [vmem:[#allocation2] sm:$0xff]
        %v247 = vld [vmem:[#allocation2 + $0x8] sm:$0xff]
        %v248 = vld [vmem:[#allocation2 + $0x10] sm:$0x3]
        %v249 = vld [vmem:[#allocation2 + $0x18] sm:$0xff]
        %v250 = vld [vmem:[#allocation2 + $0x20] sm:$0xff]
        %v251 = vld [vmem:[#allocation2 + $0x28] sm:$0x3]
        %s252 = sld [smem:[#allocation7]]
        %v253 = vstv %s252
        %v254 = vmul.f32 %v253, %v246
        %v255 = vmul.f32 %v253, %v247
        %v256 = vadd.f32 %v254, 0.0
        %v257 = vadd.f32 %v255, 0.0
        %s258 = sld [smem:[#allocation7 + $0x1]]
        %v259 = vstv %s258
        %v260 = vmul.f32 %v259, %v246
        %v261 = vmul.f32 %v259, %v247
        %264 = vrot.lane.b32.xlu0 %v260, 127
        %v265 = vpop.permute.xlu0 %264
        %266 = vrot.lane.b32.xlu0 %v261, 127
        %v267 = vpop.permute.xlu0 %266
        %v270 = vadd.f32 %v256, %v265
        %v271 = vadd.f32 %v257, %v267
        %s272 = sld [smem:[#allocation7 + $0x2]]
        %v273 = vstv %s272
        %v274 = vmul.f32 %v273, %v246
        %v275 = vmul.f32 %v273, %v247
        %278 = vrot.lane.b32.xlu0 %v274, 126
        %v279 = vpop.permute.xlu0 %278
        %280 = vrot.lane.b32.xlu0 %v275, 126
        %v281 = vpop.permute.xlu0 %280
        %v284 = vadd.f32 %v270, %v279
        %v285 = vadd.f32 %v271, %v281
        %s286 = sld [smem:[#allocation7 + $0x3]]
        %v287 = vstv %s286
        %v288 = vmul.f32 %v287, %v246
        %v289 = vmul.f32 %v287, %v247
        %v290 = vmul.f32 %v287, %v248
        %vm294 = vcmask 1046528
        %v295 = vrot.slane %v288, 1
        %v296 = vrot.slane %v289, 1
        %v297 = vsel %vm294, %v295, %v296
        %v298 = vrot.slane %v290, 1
        %v299 = vsel %vm294, %v296, %v298
        %v302 = vadd.f32 %v284, %v297
        %v303 = vadd.f32 %v285, %v299
        %s304 = sld [smem:[#allocation7 + $0x4]]
        %v305 = vstv %s304
        %v306 = vmul.f32 %v305, %v246
        %v307 = vmul.f32 %v305, %v247
        %v308 = vmul.f32 %v305, %v248
        %v312 = vrot.slane %v306, 1
        %v313 = vrot.slane %v307, 1
        %v314 = vsel %vm294, %v312, %v313
        %v315 = vrot.slane %v308, 1
        %v316 = vsel %vm294, %v313, %v315
        %317 = vrot.lane.b32.xlu0 %v314, 127
        %v318 = vpop.permute.xlu0 %317
        %319 = vrot.lane.b32.xlu0 %v316, 127
        %v320 = vpop.permute.xlu0 %319
        %v323 = vadd.f32 %v302, %v318
        %v324 = vadd.f32 %v303, %v320
        %s325 = sld [smem:[#allocation7 + $0x5]]
        %v326 = vstv %s325
        %v327 = vmul.f32 %v326, %v246
        %v328 = vmul.f32 %v326, %v247
        %v329 = vmul.f32 %v326, %v248
        %v333 = vrot.slane %v327, 1
        %v334 = vrot.slane %v328, 1
        %v335 = vsel %vm294, %v333, %v334
        %v336 = vrot.slane %v329, 1
        %v337 = vsel %vm294, %v334, %v336
        %338 = vrot.lane.b32.xlu0 %v335, 126
        %v339 = vpop.permute.xlu0 %338
        %340 = vrot.lane.b32.xlu0 %v337, 126
        %v341 = vpop.permute.xlu0 %340
        %v344 = vadd.f32 %v323, %v339
        %v345 = vadd.f32 %v324, %v341
        %s346 = sld [smem:[#allocation7 + $0x6]]
        %v347 = vstv %s346
        %v348 = vmul.f32 %v347, %v246
        %v349 = vmul.f32 %v347, %v247
        %v350 = vmul.f32 %v347, %v248
        %vm354 = vcmask 1045504
        %v355 = vrot.slane %v348, 2
        %v356 = vrot.slane %v349, 2
        %v357 = vsel %vm354, %v355, %v356
        %v358 = vrot.slane %v350, 2
        %v359 = vsel %vm354, %v356, %v358
        %v362 = vadd.f32 %v344, %v357
        %v363 = vadd.f32 %v345, %v359
        %s364 = sld [smem:[#allocation7 + $0x7]]
        %v365 = vstv %s364
        %v366 = vmul.f32 %v365, %v246
        %v367 = vmul.f32 %v365, %v247
        %v368 = vmul.f32 %v365, %v248
        %v372 = vrot.slane %v366, 2
        %v373 = vrot.slane %v367, 2
        %v374 = vsel %vm354, %v372, %v373
        %v375 = vrot.slane %v368, 2
        %v376 = vsel %vm354, %v373, %v375
        %377 = vrot.lane.b32.xlu0 %v374, 127
        %v378 = vpop.permute.xlu0 %377
        %379 = vrot.lane.b32.xlu0 %v376, 127
        %v380 = vpop.permute.xlu0 %379
        %v383 = vadd.f32 %v362, %v378
        %v384 = vadd.f32 %v363, %v380
        %s385 = sld [smem:[#allocation7 + $0x8]]
        %v386 = vstv %s385
        %v387 = vmul.f32 %v386, %v246
        %v388 = vmul.f32 %v386, %v247
        %v389 = vmul.f32 %v386, %v248
        %v393 = vrot.slane %v387, 2
        %v394 = vrot.slane %v388, 2
        %v395 = vsel %vm354, %v393, %v394
        %v396 = vrot.slane %v389, 2
        %v397 = vsel %vm354, %v394, %v396
        %398 = vrot.lane.b32.xlu0 %v395, 126
        %v399 = vpop.permute.xlu0 %398
        %400 = vrot.lane.b32.xlu0 %v397, 126
        %v401 = vpop.permute.xlu0 %400
        %v404 = vadd.f32 %v383, %v399
        %v405 = vadd.f32 %v384, %v401
        %s406 = sld [smem:[#allocation7 + $0x9]]
        %v407 = vstv %s406
        %v408 = vmul.f32 %v407, %v249
        %v409 = vmul.f32 %v407, %v250
        %v410 = vadd.f32 %v404, %v408
        %v411 = vadd.f32 %v405, %v409
        %s412 = sld [smem:[#allocation7 + $0xa]]
        %v413 = vstv %s412
        %v414 = vmul.f32 %v413, %v249
        %v415 = vmul.f32 %v413, %v250
        %418 = vrot.lane.b32.xlu0 %v414, 127
        %v419 = vpop.permute.xlu0 %418
        %420 = vrot.lane.b32.xlu0 %v415, 127
        %v421 = vpop.permute.xlu0 %420
        %v424 = vadd.f32 %v410, %v419
        %v425 = vadd.f32 %v411, %v421
        %s426 = sld [smem:[#allocation7 + $0xb]]
        %v427 = vstv %s426
        %v428 = vmul.f32 %v427, %v249
        %v429 = vmul.f32 %v427, %v250
        %432 = vrot.lane.b32.xlu0 %v428, 126
        %v433 = vpop.permute.xlu0 %432
        %434 = vrot.lane.b32.xlu0 %v429, 126
        %v435 = vpop.permute.xlu0 %434
        %v438 = vadd.f32 %v424, %v433
        %v439 = vadd.f32 %v425, %v435
        %s440 = sld [smem:[#allocation7 + $0xc]]
        %v441 = vstv %s440
        %v442 = vmul.f32 %v441, %v249
        %v443 = vmul.f32 %v441, %v250
        %v444 = vmul.f32 %v441, %v251
        %v448 = vrot.slane %v442, 1
        %v449 = vrot.slane %v443, 1
        %v450 = vsel %vm294, %v448, %v449
        %v451 = vrot.slane %v444, 1
        %v452 = vsel %vm294, %v449, %v451
        %v455 = vadd.f32 %v438, %v450
        %v456 = vadd.f32 %v439, %v452
        %s457 = sld [smem:[#allocation7 + $0xd]]
        %v458 = vstv %s457
        %v459 = vmul.f32 %v458, %v249
        %v460 = vmul.f32 %v458, %v250
        %v461 = vmul.f32 %v458, %v251
        %v465 = vrot.slane %v459, 1
        %v466 = vrot.slane %v460, 1
        %v467 = vsel %vm294, %v465, %v466
        %v468 = vrot.slane %v461, 1
        %v469 = vsel %vm294, %v466, %v468
        %470 = vrot.lane.b32.xlu0 %v467, 127
        %v471 = vpop.permute.xlu0 %470
        %472 = vrot.lane.b32.xlu0 %v469, 127
        %v473 = vpop.permute.xlu0 %472
        %v476 = vadd.f32 %v455, %v471
        %v477 = vadd.f32 %v456, %v473
        %s478 = sld [smem:[#allocation7 + $0xe]]
        %v479 = vstv %s478
        %v480 = vmul.f32 %v479, %v249
        %v481 = vmul.f32 %v479, %v250
        %v482 = vmul.f32 %v479, %v251
        %v486 = vrot.slane %v480, 1
        %v487 = vrot.slane %v481, 1
        %v488 = vsel %vm294, %v486, %v487
        %v489 = vrot.slane %v482, 1
        %v490 = vsel %vm294, %v487, %v489
        %491 = vrot.lane.b32.xlu0 %v488, 126
        %v492 = vpop.permute.xlu0 %491
        %493 = vrot.lane.b32.xlu0 %v490, 126
        %v494 = vpop.permute.xlu0 %493
        %v497 = vadd.f32 %v476, %v492
        %v498 = vadd.f32 %v477, %v494
        %s499 = sld [smem:[#allocation7 + $0xf]]
        %v500 = vstv %s499
        %v501 = vmul.f32 %v500, %v249
        %v502 = vmul.f32 %v500, %v250
        %v503 = vmul.f32 %v500, %v251
        %v507 = vrot.slane %v501, 2
        %v508 = vrot.slane %v502, 2
        %v509 = vsel %vm354, %v507, %v508
        %v510 = vrot.slane %v503, 2
        %v511 = vsel %vm354, %v508, %v510
        %v514 = vadd.f32 %v497, %v509
        %v515 = vadd.f32 %v498, %v511
        %s516 = sld [smem:[#allocation7 + $0x10]]
        %v517 = vstv %s516
        %v518 = vmul.f32 %v517, %v249
        %v519 = vmul.f32 %v517, %v250
        %v520 = vmul.f32 %v517, %v251
        %v524 = vrot.slane %v518, 2
        %v525 = vrot.slane %v519, 2
        %v526 = vsel %vm354, %v524, %v525
        %v527 = vrot.slane %v520, 2
        %v528 = vsel %vm354, %v525, %v527
        %529 = vrot.lane.b32.xlu0 %v526, 127
        %v530 = vpop.permute.xlu0 %529
        %531 = vrot.lane.b32.xlu0 %v528, 127
        %v532 = vpop.permute.xlu0 %531
        %v535 = vadd.f32 %v514, %v530
        %v536 = vadd.f32 %v515, %v532
        %s537 = sld [smem:[#allocation7 + $0x11]]
        %v538 = vstv %s537
        %v539 = vmul.f32 %v538, %v249
        %v540 = vmul.f32 %v538, %v250
        %v541 = vmul.f32 %v538, %v251
        %v545 = vrot.slane %v539, 2
        %v546 = vrot.slane %v540, 2
        %v547 = vsel %vm354, %v545, %v546
        %v548 = vrot.slane %v541, 2
        %v549 = vsel %vm354, %v546, %v548
        %550 = vrot.lane.b32.xlu0 %v547, 126
        %v551 = vpop.permute.xlu0 %550
        %552 = vrot.lane.b32.xlu0 %v549, 126
        %v553 = vpop.permute.xlu0 %552
        %v556 = vadd.f32 %v535, %v551
        %v557 = vadd.f32 %v536, %v553
        %v558 = vsub.f32 0.0, %v556
        %v559 = vsub.f32 0.0, %v557
        %v560 = vmul.f32 %v558, 1.442695
        %v561 = vpow.pop %v560
        %v562 = vmul.f32 %v559, 1.442695
        %v563 = vpow.pop %v562
        %v564 = vadd.f32 %v561, 1.0
        %v565 = vadd.f32 %v563, 1.0
        %v566 = vrcp.pop %v564
        %v567 = vmul.f32 1.0, %v566
        %v568 = vrcp.pop %v565
        %v569 = vmul.f32 1.0, %v568
        %570 = vst.msk [vmem:[%s175] sm:$0xff] %vm184, %v567
        %571 = vst.msk [vmem:[%s175 + $0x8] sm:$0xff] %vm184, %v569
        %s572 = sand.u32 %s75, 1
        %s573 = scalar_lea.sflag [#allocation5], %s572
        %s574 = sand.u32 %s75, 1
        %s575 = smul.addr %s574, 16
        %s576 = scalar_lea.vmem [#allocation8], %s575
        // Predicated region
        $region37: #{tpu_custom_call.1} parent=27 // pred_check
          %p577 = pneg %p85
        $region38: #{tpu_custom_call.1} parent=27 // pred_check_branch
          %579 = sbr.rel (%p577) target = $region40
        $region39: #{tpu_custom_call.1} parent=27 // pred_region
          %s581 = ssub.s32 256, 256
          %582 = vsyncadd %s573, %s581
          %s583 = smul.addr %s20, 2
          %s584 = smul.addr %s583, 128
          %s585 = scalar_lea.hbm %s2, %s584
          %s586 = sshll.u32 %s576, 4
          %s587 = int_to_ptr.vmem [resolvable:$true] %s586
          %592 = dma.vmem_to_hbm [thread:$0]  %s587, 256, %s585, %s573, 128, 128, 8
        $region40: #{tpu_custom_call.1} parent=27 // pred_fallthru
          _
      $region28: #{tpu_custom_call.1} parent=5 // pred_fallthru
        _
      %p593 = scmp.le.s32.totalorder 2, %s15
      // Predicated region
      $region41: #{tpu_custom_call.1} parent=5 // pred_check
        %p594 = pneg %p593
      $region42: #{tpu_custom_call.1} parent=5 // pred_check_branch
        %596 = sbr.rel (%p594) target = $region44
      $region43: #{tpu_custom_call.1} parent=5 // pred_region
        %s597 = ssub.s32 %s15, 2
        // Predicated region
        $region45: #{tpu_custom_call.1} parent=43 // pred_check
          %p598 = pneg %p91
        $region46: #{tpu_custom_call.1} parent=43 // pred_check_branch
          %600 = sbr.rel (%p598) target = $region48
        $region47: #{tpu_custom_call.1} parent=43 // pred_region
          %s601 = sand.u32 %s76, 1
          %s602 = scalar_lea.sflag [#allocation5], %s601
          %s603 = sand.u32 %s76, 1
          %s604 = smul.addr %s603, 16
          %s605 = scalar_lea.vmem [#allocation8], %s604
          %606 = dma.done %s602, 256
        $region48: #{tpu_custom_call.1} parent=43 // pred_fallthru
          _
      $region44: #{tpu_custom_call.1} parent=5 // pred_fallthru
        _
    $region6: #{tpu_custom_call.1} parent=1 // loop_footer
      %s19 = sadd.s32 1, %s15
    $region7: #{tpu_custom_call.1} parent=1 // loop_footer_branch
      %14 = sbr.rel target = $region3
    $region8: #{tpu_custom_call.1} parent=1 // loop_exit
      _
    %607 = vsyncpa [#allocation4], 1
    %s608 = scalar_lea.sflag [#allocation4], 1
    %609 = vsyncpa %s608, 1
    %610 = vsyncpa [#allocation5], 1
    %s611 = scalar_lea.sflag [#allocation5], 1
    %612 = vsyncpa %s611, 1
    %613 = vsyncpa [#allocation6], 1
    %s614 = scalar_lea.sflag [#allocation6], 1
    %615 = vsyncpa %s614, 1

</llo_original>
